<compile_context>
chip_gen: v7x
topology: tpu7x:2x2x1
jax: 0.10.0
libtpu: 0.0.40
codegen_flags: <defaults>
</compile_context>

<pallas_src>
import jax
import jax.numpy as jnp
from jax.experimental import pallas as pl
from jax.experimental.pallas import tpu as pltpu

# ----------------------------- configuration --------------------------------
D_STATE = 16            # raw state dim
D_GOAL  = 8             # goal dim
D_IN    = D_STATE + D_GOAL
H_ENC   = 32            # encoder hidden
D_EMB   = 32            # embedding dim (encoder output)
H_MODEL = 32            # policy-head hidden
D_ACT   = 8             # action dim
LANE    = 128           # TPU lane width (padded output / slab width)
TB_MAX  = 256           # batch-tile rows for large batches (mult. of 8)

def _align8(n):
    return -(-n // 8) * 8

# Row layout of the packed parameter slab [R_TOTAL, 128] (all starts 8-aligned).
W1_R0 = 0                              # we1 : [D_IN,   H_ENC]
B1_R0 = W1_R0 + _align8(D_IN)          # be1 : [1,      H_ENC]
W2_R0 = B1_R0 + 8                      # we2 : [H_ENC,  D_EMB]
B2_R0 = W2_R0 + _align8(H_ENC)         # be2 : [1,      D_EMB]
W3_R0 = B2_R0 + 8                      # wm1 : [D_EMB,  H_MODEL]
B3_R0 = W3_R0 + _align8(D_EMB)         # bm1 : [1,      H_MODEL]
W4_R0 = B3_R0 + 8                      # wm2 : [H_MODEL, D_ACT] (cols padded to 128)
B4_R0 = W4_R0 + _align8(H_MODEL)       # bm2 : [1,       D_ACT] (cols padded to 128)
R_TOTAL = B4_R0 + 8                    # = 152 rows, 152*128*4 B ~= 78 KiB


# ------------------------------ Pallas kernel --------------------------------
def bc_policy_kernel(state_ref, goal_ref, p_ref, out_ref):
    s = state_ref[...]                                   # [TB, D_STATE] f32
    g = goal_ref[...]                                    # [TB, D_GOAL]  f32

    # obs_encoder layer 1 (concat fused into two partial matmuls) + ReLU
    w1s = p_ref[W1_R0:W1_R0 + D_STATE, :H_ENC]
    w1g = p_ref[W1_R0 + D_STATE:W1_R0 + D_IN, :H_ENC]
    b1  = p_ref[B1_R0:B1_R0 + 1, :H_ENC]
    h = (jnp.dot(s, w1s, preferred_element_type=jnp.float32)
         + jnp.dot(g, w1g, preferred_element_type=jnp.float32) + b1)
    h = jnp.maximum(h, 0.0)

    # obs_encoder layer 2 + ReLU
    w2 = p_ref[W2_R0:W2_R0 + H_ENC, :D_EMB]
    b2 = p_ref[B2_R0:B2_R0 + 1, :D_EMB]
    e = jnp.maximum(jnp.dot(h, w2, preferred_element_type=jnp.float32) + b2, 0.0)

    # model head layer 1 + ReLU
    w3 = p_ref[W3_R0:W3_R0 + D_EMB, :H_MODEL]
    b3 = p_ref[B3_R0:B3_R0 + 1, :H_MODEL]
    m = jnp.maximum(jnp.dot(e, w3, preferred_element_type=jnp.float32) + b3, 0.0)

    # model head layer 2 (no activation). Output lanes padded to 128 -> dense vst.
    w4 = p_ref[W4_R0:W4_R0 + H_MODEL, :]                 # [H_MODEL, 128], zero-padded
    b4 = p_ref[B4_R0:B4_R0 + 1, :]                       # [1, 128],       zero-padded
    out_ref[...] = jnp.dot(m, w4, preferred_element_type=jnp.float32) + b4


# ------------------------------- wrapper --------------------------------------
def pack_params(params):
    """Pack the 8 Linear parameter tensors into one padded [R_TOTAL, 128] slab."""
    we1, be1, we2, be2, wm1, bm1, wm2, bm2 = params
    slab = jnp.zeros((R_TOTAL, LANE), jnp.float32)
    slab = slab.at[W1_R0:W1_R0 + D_IN,    :H_ENC].set(we1)
    slab = slab.at[B1_R0:B1_R0 + 1,       :H_ENC].set(be1)
    slab = slab.at[W2_R0:W2_R0 + H_ENC,   :D_EMB].set(we2)
    slab = slab.at[B2_R0:B2_R0 + 1,       :D_EMB].set(be2)
    slab = slab.at[W3_R0:W3_R0 + D_EMB,   :H_MODEL].set(wm1)
    slab = slab.at[B3_R0:B3_R0 + 1,       :H_MODEL].set(bm1)
    slab = slab.at[W4_R0:W4_R0 + H_MODEL, :D_ACT].set(wm2)
    slab = slab.at[B4_R0:B4_R0 + 1,       :D_ACT].set(bm2)
    return slab


def bc_policy_forward(state, goal, packed_params):
    """Pallas-backed BC_Policy.forward (goal-conditioned, non-visual path)."""
    # TODO(synk): goal=None (state-only encoder config) and visual_input=True
    #             (ResNet obs_encoder over image dicts) depend on unspecified
    #             hydra configs and are not implemented here.
    b = state.shape[0]

    if b <= TB_MAX:
        tb, b_pad = b, b                      # single full-array block, no padding
    else:
        tb = TB_MAX
        b_pad = pl.cdiv(b, tb) * tb
        if b_pad != b:
            pad = b_pad - b
            state = jnp.pad(state, ((0, pad), (0, 0)))
            goal = jnp.pad(goal, ((0, pad), (0, 0)))

    grid = (b_pad // tb,)
    flops = 2 * b_pad * (D_IN * H_ENC + H_ENC * D_EMB + D_EMB * H_MODEL + H_MODEL * D_ACT)
    bytes_accessed = 4 * (b_pad * (D_STATE + D_GOAL + LANE) + R_TOTAL * LANE)

    out = pl.pallas_call(
        bc_policy_kernel,
        out_shape=jax.ShapeDtypeStruct((b_pad, LANE), jnp.float32),
        grid_spec=pltpu.PrefetchScalarGridSpec(
            num_scalar_prefetch=0,
            grid=grid,
            in_specs=[
                pl.BlockSpec((tb, D_STATE), lambda i: (i, 0)),        # state tile
                pl.BlockSpec((tb, D_GOAL), lambda i: (i, 0)),         # goal tile
                pl.BlockSpec((R_TOTAL, LANE), lambda i: (0, 0)),      # weights, resident
            ],
            out_specs=pl.BlockSpec((tb, LANE), lambda i: (i, 0)),
        ),
        compiler_params=pltpu.CompilerParams(
            dimension_semantics=("parallel",)),
        cost_estimate=pl.CostEstimate(
            flops=flops, transcendentals=0, bytes_accessed=bytes_accessed),
    )(state, goal, packed_params)

    return out[:b, :D_ACT]


# ------------------------------ params & reference ----------------------------
def init_params(key):
    """Deterministic init matching nn.Linear shapes, stored as [in, out]."""
    ks = jax.random.split(key, 8)

    def lin(kw, kb, d_in, d_out):
        scale = 1.0 / jnp.sqrt(d_in)
        w = jax.random.uniform(kw, (d_in, d_out), jnp.float32, -scale, scale)
        bias = jax.random.uniform(kb, (1, d_out), jnp.float32, -scale, scale)
        return w, bias

    we1, be1 = lin(ks[0], ks[1], D_IN, H_ENC)
    we2, be2 = lin(ks[2], ks[3], H_ENC, D_EMB)
    wm1, bm1 = lin(ks[4], ks[5], D_EMB, H_MODEL)
    wm2, bm2 = lin(ks[6], ks[7], H_MODEL, D_ACT)
    return (we1, be1, we2, be2, wm1, bm1, wm2, bm2)


def bc_policy_forward_ref(state, goal, params):
    """Pure-JAX reference for correctness check."""
    x = jnp.concatenate([state, goal], axis=-1)
    we1, be1, we2, be2, wm1, bm1, wm2, bm2 = params
    h = jnp.maximum(x @ we1 + be1, 0.0)
    e = jnp.maximum(h @ we2 + be2, 0.0)
    m = jnp.maximum(e @ wm1 + bm1, 0.0)
    return m @ wm2 + bm2


# ----------------------------------- main -------------------------------------
if __name__ == "__main__":
    key = jax.random.PRNGKey(0)
    k_state, k_goal, k_params, k_state2, k_goal2 = jax.random.split(key, 5)

    params = init_params(k_params)
    packed = pack_params(params)          # one-time host-side packing (1 DMA/fwd)

    # Small demo shapes (batch=2).
    B = 2
    state = jax.random.normal(k_state, (B, D_STATE), jnp.float32)
    goal = jax.random.normal(k_goal, (B, D_GOAL), jnp.float32)

    pred = jax.block_until_ready(bc_policy_forward(state, goal, packed))
    ref = bc_policy_forward_ref(state, goal, params)
    assert pred.shape == (B, D_ACT)
    assert jnp.allclose(pred, ref, atol=1e-5, rtol=1e-5), "mismatch vs reference (B=2)"

    # Exercise the batched/tiled path (padding + multi-step grid, weights resident).
    B2 = 300
    state2 = jax.random.normal(k_state2, (B2, D_STATE), jnp.float32)
    goal2 = jax.random.normal(k_goal2, (B2, D_GOAL), jnp.float32)
    pred2 = jax.block_until_ready(bc_policy_forward(state2, goal2, packed))
    ref2 = bc_policy_forward_ref(state2, goal2, params)
    assert pred2.shape == (B2, D_ACT)
    assert jnp.allclose(pred2, ref2, atol=1e-5, rtol=1e-5), "mismatch vs reference (B=300)"

    print("KERNEL_OK")
</pallas_src>

<mosaic_0001>
module attributes {stable_mosaic.version = 11 : i64} {
  func.func @bc_policy_kernel(%arg0: i32, %arg1: memref<2x16xf32, #tpu.memory_space<vmem>>, %arg2: memref<2x8xf32, #tpu.memory_space<vmem>>, %arg3: memref<152x128xf32, #tpu.memory_space<vmem>>, %arg4: memref<2x128xf32, #tpu.memory_space<vmem>>) attributes {dimension_semantics = [#tpu.dimension_semantics<parallel>], iteration_bounds = array<i64: 1>, scalar_prefetch = 0 : i64, scratch_operands = 0 : i64, tpu.core_type = #tpu.core_type<tc>, window_params = [{transform_indices = @transform_0, window_bounds = array<i64: 2, 16>}, {transform_indices = @transform_1, window_bounds = array<i64: 2, 8>}, {pipeline_mode = #tpu.pipeline_mode<synchronous>, transform_indices = @transform_2, window_bounds = array<i64: 152, 128>}, {transform_indices = @transform_3, window_bounds = array<i64: 2, 128>}]} {
    %c0 = arith.constant 0 : index
    %c0_0 = arith.constant 0 : index
    %0 = vector.load %arg1[%c0, %c0_0] : memref<2x16xf32, #tpu.memory_space<vmem>>, vector<2x16xf32>
    %c0_1 = arith.constant 0 : index
    %c0_2 = arith.constant 0 : index
    %1 = vector.load %arg2[%c0_1, %c0_2] : memref<2x8xf32, #tpu.memory_space<vmem>>, vector<2x8xf32>
    %c0_3 = arith.constant 0 : index
    %c0_4 = arith.constant 0 : index
    %2 = vector.load %arg3[%c0_3, %c0_4] : memref<152x128xf32, #tpu.memory_space<vmem>>, vector<16x32xf32>
    %c16 = arith.constant 16 : index
    %c0_5 = arith.constant 0 : index
    %3 = vector.load %arg3[%c16, %c0_5] : memref<152x128xf32, #tpu.memory_space<vmem>>, vector<8x32xf32>
    %c24 = arith.constant 24 : index
    %c0_6 = arith.constant 0 : index
    %4 = vector.load %arg3[%c24, %c0_6] : memref<152x128xf32, #tpu.memory_space<vmem>>, vector<1x32xf32>
    %cst = arith.constant dense<0.000000e+00> : vector<2x32xf32>
    %5 = tpu.matmul %0, %2, %cst {dimension_numbers = #tpu.dot_dimension_numbers<[1], [0], [0], [1], [0, 0, 1, 1], [], []>} : vector<2x16xf32>, vector<16x32xf32>, vector<2x32xf32> -> vector<2x32xf32>
    %cst_7 = arith.constant dense<0.000000e+00> : vector<2x32xf32>
    %6 = tpu.matmul %1, %3, %cst_7 {dimension_numbers = #tpu.dot_dimension_numbers<[1], [0], [0], [1], [0, 0, 1, 1], [], []>} : vector<2x8xf32>, vector<8x32xf32>, vector<2x32xf32> -> vector<2x32xf32>
    %7 = arith.addf %5, %6 : vector<2x32xf32>
    %8 = vector.broadcast %4 : vector<1x32xf32> to vector<2x32xf32>
    %9 = arith.addf %7, %8 : vector<2x32xf32>
    %cst_8 = arith.constant 0.000000e+00 : f32
    %10 = vector.broadcast %cst_8 : f32 to vector<2x32xf32>
    %11 = arith.maximumf %9, %10 : vector<2x32xf32>
    %c32 = arith.constant 32 : index
    %c0_9 = arith.constant 0 : index
    %12 = vector.load %arg3[%c32, %c0_9] : memref<152x128xf32, #tpu.memory_space<vmem>>, vector<32x32xf32>
    %c64 = arith.constant 64 : index
    %c0_10 = arith.constant 0 : index
    %13 = vector.load %arg3[%c64, %c0_10] : memref<152x128xf32, #tpu.memory_space<vmem>>, vector<1x32xf32>
    %cst_11 = arith.constant dense<0.000000e+00> : vector<2x32xf32>
    %14 = tpu.matmul %11, %12, %cst_11 {dimension_numbers = #tpu.dot_dimension_numbers<[1], [0], [0], [1], [0, 0, 1, 1], [], []>} : vector<2x32xf32>, vector<32x32xf32>, vector<2x32xf32> -> vector<2x32xf32>
    %15 = vector.broadcast %13 : vector<1x32xf32> to vector<2x32xf32>
    %16 = arith.addf %14, %15 : vector<2x32xf32>
    %cst_12 = arith.constant 0.000000e+00 : f32
    %17 = vector.broadcast %cst_12 : f32 to vector<2x32xf32>
    %18 = arith.maximumf %16, %17 : vector<2x32xf32>
    %c72 = arith.constant 72 : index
    %c0_13 = arith.constant 0 : index
    %19 = vector.load %arg3[%c72, %c0_13] : memref<152x128xf32, #tpu.memory_space<vmem>>, vector<32x32xf32>
    %c104 = arith.constant 104 : index
    %c0_14 = arith.constant 0 : index
    %20 = vector.load %arg3[%c104, %c0_14] : memref<152x128xf32, #tpu.memory_space<vmem>>, vector<1x32xf32>
    %cst_15 = arith.constant dense<0.000000e+00> : vector<2x32xf32>
    %21 = tpu.matmul %18, %19, %cst_15 {dimension_numbers = #tpu.dot_dimension_numbers<[1], [0], [0], [1], [0, 0, 1, 1], [], []>} : vector<2x32xf32>, vector<32x32xf32>, vector<2x32xf32> -> vector<2x32xf32>
    %22 = vector.broadcast %20 : vector<1x32xf32> to vector<2x32xf32>
    %23 = arith.addf %21, %22 : vector<2x32xf32>
    %cst_16 = arith.constant 0.000000e+00 : f32
    %24 = vector.broadcast %cst_16 : f32 to vector<2x32xf32>
    %25 = arith.maximumf %23, %24 : vector<2x32xf32>
    %c112 = arith.constant 112 : index
    %c0_17 = arith.constant 0 : index
    %26 = vector.load %arg3[%c112, %c0_17] : memref<152x128xf32, #tpu.memory_space<vmem>>, vector<32x128xf32>
    %c144 = arith.constant 144 : index
    %c0_18 = arith.constant 0 : index
    %27 = vector.load %arg3[%c144, %c0_18] : memref<152x128xf32, #tpu.memory_space<vmem>>, vector<1x128xf32>
    %cst_19 = arith.constant dense<0.000000e+00> : vector<2x128xf32>
    %28 = tpu.matmul %25, %26, %cst_19 {dimension_numbers = #tpu.dot_dimension_numbers<[1], [0], [0], [1], [0, 0, 1, 1], [], []>} : vector<2x32xf32>, vector<32x128xf32>, vector<2x128xf32> -> vector<2x128xf32>
    %29 = vector.broadcast %27 : vector<1x128xf32> to vector<2x128xf32>
    %30 = arith.addf %28, %29 : vector<2x128xf32>
    %c0_20 = arith.constant 0 : index
    %c0_21 = arith.constant 0 : index
    %31 = vector.load %arg4[%c0_20, %c0_21] : memref<2x128xf32, #tpu.memory_space<vmem>>, vector<2x128xf32>
    tpu.vector_store %arg4[%c0_20, %c0_21], %30 {strides = array<i32>} : memref<2x128xf32, #tpu.memory_space<vmem>>, vector<2x128xf32>,
    return
  }
  func.func @transform_0(%arg0: i32) -> (i32, i32) {
    %c0_i32 = arith.constant 0 : i32
    %c0_i32_0 = arith.constant 0 : i32
    return %arg0, %c0_i32 : i32, i32
  }
  func.func @transform_1(%arg0: i32) -> (i32, i32) {
    %c0_i32 = arith.constant 0 : i32
    %c0_i32_0 = arith.constant 0 : i32
    return %arg0, %c0_i32 : i32, i32
  }
  func.func @transform_2(%arg0: i32) -> (i32, i32) {
    %c0_i32 = arith.constant 0 : i32
    %c0_i32_0 = arith.constant 0 : i32
    %c0_i32_1 = arith.constant 0 : i32
    return %c0_i32, %c0_i32_0 : i32, i32
  }
  func.func @transform_3(%arg0: i32) -> (i32, i32) {
    %c0_i32 = arith.constant 0 : i32
    %c0_i32_0 = arith.constant 0 : i32
    return %arg0, %c0_i32 : i32, i32
  }
}

</mosaic_0001>

<llo_original>
// kernel: tpu_custom_call.1
$region0: #{tpu_custom_call.1}
  #allocation0 [shape = 'u32[]', space=smem, size = 0x4, offset = 0x4, fixed_abs, tag = 'smem constant byte address 0x4 - core index']
  #allocation1 [shape = 'u32[144,128]{1,0:T(1,128)}', space=vmem, size = 0x12000, scoped, tag = 'internal scratch']
  %s0 = inlined_call_operand.hbm [shape: f32[2,16], index: 0, kind: input, shape index: {}]
  %s1 = inlined_call_operand.vmem [shape: f32[2,8], index: 1, kind: input, shape index: {}]
  %s2 = inlined_call_operand.hbm [shape: f32[152,128], index: 2, kind: input, shape index: {}]
  %s3 = inlined_call_operand.hbm [shape: f32[2,128], index: 3, kind: output, shape index: {}]
  %s4 = sld [smem:[#allocation0]]
  $region30: #{tpu_custom_call.1} parent=0
    _
  %s6 = ssub.s32 1, %s4
  %s7 = scalar_select 0, %s6, %s4
  $region1: #{tpu_custom_call.1} parent=0
    #allocation2 [shape = 'u8[1024]{0}', space=vmem, size = 0x400, scoped, tag = 'input window, operand 0, single buffered']
    #allocation3 [shape = 's32[1]{0}', space=sflag, size = 0x4, scoped, tag = 'scoped memory for tpu_custom_call.1']
    #allocation4 [shape = 's32[1]{0}', space=sflag, size = 0x4, scoped, tag = 'scoped memory for tpu_custom_call.1']
    #allocation5 [shape = 'u8[77824]{0}', space=vmem, size = 0x13000, scoped, tag = 'input window, operand 2, single buffered']
    #allocation6 [shape = 's32[1]{0}', space=sflag, size = 0x4, scoped, tag = 'scoped memory for tpu_custom_call.1']
    #allocation7 [shape = 'u8[1024]{0}', space=vmem, size = 0x400, scoped, tag = 'output window, operand 0, single buffered']
    %8 = vsyncpa [#allocation3], 0
    %9 = vsyncpa [#allocation6], 0
    %10 = vsyncpa [#allocation4], 0
    // Predicated region
    $region2: #{tpu_custom_call.1} parent=1 // pred_check
      _
    $region3: #{tpu_custom_call.1} parent=1 // pred_check_branch
      %12 = sbr.rel (0) target = $region5
    $region4: #{tpu_custom_call.1} parent=1 // pred_region
      %s14 = ssub.s32 32, 32
      %15 = vsyncadd [#allocation3], %s14
      %s17 = sshll.u32 [#allocation2], 4
      %s18 = int_to_ptr.vmem [resolvable:$true] %s17
      %20 = dma.hbm_to_vmem [thread:$0]  %s0, 32, %s18, [#allocation3]
    $region5: #{tpu_custom_call.1} parent=1 // pred_fallthru
      _
    // Predicated region
    $region6: #{tpu_custom_call.1} parent=1 // pred_check
      _
    $region7: #{tpu_custom_call.1} parent=1 // pred_check_branch
      %22 = sbr.rel (0) target = $region9
    $region8: #{tpu_custom_call.1} parent=1 // pred_region
      _
    $region9: #{tpu_custom_call.1} parent=1 // pred_fallthru
      _
    // Predicated region
    $region10: #{tpu_custom_call.1} parent=1 // pred_check
      _
    $region11: #{tpu_custom_call.1} parent=1 // pred_check_branch
      %24 = sbr.rel (0) target = $region13
    $region12: #{tpu_custom_call.1} parent=1 // pred_region
      %s26 = ssub.s32 2432, 2432
      %27 = vsyncadd [#allocation6], %s26
      %s28 = sshll.u32 [#allocation5], 4
      %s29 = int_to_ptr.vmem [resolvable:$true] %s28
      %34 = dma.hbm_to_vmem [thread:$0]  %s2, 2432, %s29, [#allocation6], 128, 128, 8
    $region13: #{tpu_custom_call.1} parent=1 // pred_fallthru
      _
    // Predicated region
    $region14: #{tpu_custom_call.1} parent=1 // pred_check
      _
    $region15: #{tpu_custom_call.1} parent=1 // pred_check_branch
      %36 = sbr.rel (0) target = $region17
    $region16: #{tpu_custom_call.1} parent=1 // pred_region
      %37 = dma.done [#allocation3], 32
    $region17: #{tpu_custom_call.1} parent=1 // pred_fallthru
      _
    // Predicated region
    $region18: #{tpu_custom_call.1} parent=1 // pred_check
      _
    $region19: #{tpu_custom_call.1} parent=1 // pred_check_branch
      %39 = sbr.rel (0) target = $region21
    $region20: #{tpu_custom_call.1} parent=1 // pred_region
      %40 = dma.done [#allocation6], 2432
    $region21: #{tpu_custom_call.1} parent=1 // pred_fallthru
      _
    %v41 = vld [vmem:[#allocation2] sm:$0x3]
    %v42 = vld [vmem:[%s1] sm:$0x3]
    %v43 = vld [vmem:[#allocation5] sm:$0xff]
    %v44 = vld [vmem:[#allocation5 + $0x8] sm:$0xff]
    %v45 = vld [vmem:[#allocation5 + $0x10] sm:$0xff]
    %v46 = vld [vmem:[#allocation5 + $0x18] sm:$0x1]
    %vm47 = vcmask 64512
    %v49 = vsel %vm47, %v42, 0
    %51 = vmatprep.subr.mxu0 0.0
    %52 = vmatpush1.msra.mxu0 %v45
    %53 = vmatprep.subr.mxu0 0.0
    %54 = vmatpush1.msra.mxu0 0.0
    %55 = vmatprep.subr.mxu0 0.0
    %56 = vmatpush1.msra.mxu0 0.0
    %57 = vmatprep.subr.mxu0 0.0
    %58 = vmatpush1.msra.mxu0 0.0
    %59 = vmatprep.subr.mxu0 0.0
    %60 = vmatpush1.msra.mxu0 0.0
    %61 = vmatprep.subr.mxu0 0.0
    %62 = vmatpush1.msra.mxu0 0.0
    %63 = vmatprep.subr.mxu0 0.0
    %64 = vmatpush1.msra.mxu0 0.0
    %65 = vmatprep.subr.mxu0 0.0
    %66 = vmatpush1.msra.mxu0 0.0
    %67 = vmatprep.subr.mxu0 0.0
    %68 = vmatpush1.msra.mxu0 0.0
    %69 = vmatprep.subr.mxu0 0.0
    %70 = vmatpush1.msra.mxu0 0.0
    %71 = vmatprep.subr.mxu0 0.0
    %72 = vmatpush1.msra.mxu0 0.0
    %73 = vmatprep.subr.mxu0 0.0
    %74 = vmatpush1.msra.mxu0 0.0
    %75 = vmatprep.subr.mxu0 0.0
    %76 = vmatpush1.msra.mxu0 0.0
    %77 = vmatprep.subr.mxu0 0.0
    %78 = vmatpush1.msra.mxu0 0.0
    %79 = vmatprep.subr.mxu0 0.0
    %80 = vmatpush1.msra.mxu0 0.0
    %81 = vmatprep.subr.mxu0 0.0
    %82 = vmatpush1.msra.mxu0 0.0
    %83 = vmatprep.subr.mxu0 0.0
    %84 = vmatpush1.msra.mxu0 0.0
    %85 = vmatprep.subr.mxu0 0.0
    %86 = vmatpush1.msra.mxu0 0.0
    %87 = vmatprep.subr.mxu0 0.0
    %88 = vmatpush1.msra.mxu0 0.0
    %89 = vmatprep.subr.mxu0 0.0
    %90 = vmatpush1.msra.mxu0 0.0
    %91 = vmatprep.subr.mxu0 0.0
    %92 = vmatpush1.msra.mxu0 0.0
    %93 = vmatprep.subr.mxu0 0.0
    %94 = vmatpush1.msra.mxu0 0.0
    %95 = vmatprep.subr.mxu0 0.0
    %96 = vmatpush1.msra.mxu0 0.0
    %97 = vmatprep.subr.mxu0 0.0
    %98 = vmatpush1.msra.mxu0 0.0
    %99 = vmatprep.subr.mxu0 0.0
    %100 = vmatpush1.msra.mxu0 0.0
    %101 = vmatprep.subr.mxu0 0.0
    %102 = vmatpush1.msra.mxu0 0.0
    %103 = vmatprep.subr.mxu0 0.0
    %104 = vmatpush1.msra.mxu0 0.0
    %105 = vmatprep.subr.mxu0 0.0
    %106 = vmatpush1.msra.mxu0 0.0
    %107 = vmatprep.subr.mxu0 0.0
    %108 = vmatpush1.msra.mxu0 0.0
    %109 = vmatprep.subr.mxu0 0.0
    %110 = vmatpush1.msra.mxu0 0.0
    %111 = vmatprep.subr.mxu0 0.0
    %112 = vmatpush1.msra.mxu0 0.0
    %113 = vmatprep.subr.mxu0 0.0
    %114 = vmatpush1.msra.mxu0 0.0
    %115 = vmatprep.mubr.f32.mxu0 0.0
    %116 = vmatmul.mubr.f32.gmra.mrb[0].mxu0 %v49
    %v117 = vpop.f32.mrb[0].mxu0
    %v118 = vadd.f32 0.0, %v117
    %v119 = vpop.f32.mrb[0].mxu0
    %120 = vdwg.mxu0
    %vm121 = vcmask 130048
    %v123 = vsel %vm121, %v41, 0
    %125 = vmatprep.subr.mxu0 0.0
    %126 = vmatpush1.msra.mxu0 %v43
    %127 = vmatprep.subr.mxu0 0.0
    %128 = vmatpush1.msra.mxu0 %v44
    %129 = vmatprep.subr.mxu0 0.0
    %130 = vmatpush1.msra.mxu0 0.0
    %131 = vmatprep.subr.mxu0 0.0
    %132 = vmatpush1.msra.mxu0 0.0
    %133 = vmatprep.subr.mxu0 0.0
    %134 = vmatpush1.msra.mxu0 0.0
    %135 = vmatprep.subr.mxu0 0.0
    %136 = vmatpush1.msra.mxu0 0.0
    %137 = vmatprep.subr.mxu0 0.0
    %138 = vmatpush1.msra.mxu0 0.0
    %139 = vmatprep.subr.mxu0 0.0
    %140 = vmatpush1.msra.mxu0 0.0
    %141 = vmatprep.subr.mxu0 0.0
    %142 = vmatpush1.msra.mxu0 0.0
    %143 = vmatprep.subr.mxu0 0.0
    %144 = vmatpush1.msra.mxu0 0.0
    %145 = vmatprep.subr.mxu0 0.0
    %146 = vmatpush1.msra.mxu0 0.0
    %147 = vmatprep.subr.mxu0 0.0
    %148 = vmatpush1.msra.mxu0 0.0
    %149 = vmatprep.subr.mxu0 0.0
    %150 = vmatpush1.msra.mxu0 0.0
    %151 = vmatprep.subr.mxu0 0.0
    %152 = vmatpush1.msra.mxu0 0.0
    %153 = vmatprep.subr.mxu0 0.0
    %154 = vmatpush1.msra.mxu0 0.0
    %155 = vmatprep.subr.mxu0 0.0
    %156 = vmatpush1.msra.mxu0 0.0
    %157 = vmatprep.subr.mxu0 0.0
    %158 = vmatpush1.msra.mxu0 0.0
    %159 = vmatprep.subr.mxu0 0.0
    %160 = vmatpush1.msra.mxu0 0.0
    %161 = vmatprep.subr.mxu0 0.0
    %162 = vmatpush1.msra.mxu0 0.0
    %163 = vmatprep.subr.mxu0 0.0
    %164 = vmatpush1.msra.mxu0 0.0
    %165 = vmatprep.subr.mxu0 0.0
    %166 = vmatpush1.msra.mxu0 0.0
    %167 = vmatprep.subr.mxu0 0.0
    %168 = vmatpush1.msra.mxu0 0.0
    %169 = vmatprep.subr.mxu0 0.0
    %170 = vmatpush1.msra.mxu0 0.0
    %171 = vmatprep.subr.mxu0 0.0
    %172 = vmatpush1.msra.mxu0 0.0
    %173 = vmatprep.subr.mxu0 0.0
    %174 = vmatpush1.msra.mxu0 0.0
    %175 = vmatprep.subr.mxu0 0.0
    %176 = vmatpush1.msra.mxu0 0.0
    %177 = vmatprep.subr.mxu0 0.0
    %178 = vmatpush1.msra.mxu0 0.0
    %179 = vmatprep.subr.mxu0 0.0
    %180 = vmatpush1.msra.mxu0 0.0
    %181 = vmatprep.subr.mxu0 0.0
    %182 = vmatpush1.msra.mxu0 0.0
    %183 = vmatprep.subr.mxu0 0.0
    %184 = vmatpush1.msra.mxu0 0.0
    %185 = vmatprep.subr.mxu0 0.0
    %186 = vmatpush1.msra.mxu0 0.0
    %187 = vmatprep.subr.mxu0 0.0
    %188 = vmatpush1.msra.mxu0 0.0
    %189 = vmatprep.mubr.f32.mxu0 0.0
    %190 = vmatmul.mubr.f32.gmra.mrb[0].mxu0 %v123
    %v191 = vpop.f32.mrb[0].mxu0
    %v192 = vadd.f32 %v118, %v191
    %v193 = vpop.f32.mrb[0].mxu0
    %194 = vdwg.mxu0
    %v195 = vlaneseq
    %v196 = vshrl.u32 %v195, 7
    %v197 = vsub.s32 0, %v196
    %v198 = vrot.slane %v46, %v197
    %v199 = vadd.f32 %v192, %v198
    %v200 = vmax.f32 %v199, 0.0
    %v201 = vld [vmem:[#allocation5 + $0x20] sm:$0xff]
    %v202 = vld [vmem:[#allocation5 + $0x28] sm:$0xff]
    %v203 = vld [vmem:[#allocation5 + $0x30] sm:$0xff]
    %v204 = vld [vmem:[#allocation5 + $0x38] sm:$0xff]
    %v205 = vld [vmem:[#allocation5 + $0x40] sm:$0x1]
    %v206 = vlaneseq
    %v207 = vshrl.u32 %v206, 7
    %v208 = vsub.s32 0, %v207
    %v209 = vrot.slane %v205, %v208
    %vm210 = vcmask 261120
    %v212 = vsel %vm210, %v200, 0
    %214 = vmatprep.subr.mxu0 0.0
    %215 = vmatpush1.msra.mxu0 %v201
    %216 = vmatprep.subr.mxu0 0.0
    %217 = vmatpush1.msra.mxu0 %v202
    %218 = vmatprep.subr.mxu0 0.0
    %219 = vmatpush1.msra.mxu0 %v203
    %220 = vmatprep.subr.mxu0 0.0
    %221 = vmatpush1.msra.mxu0 %v204
    %222 = vmatprep.subr.mxu0 0.0
    %223 = vmatpush1.msra.mxu0 0.0
    %224 = vmatprep.subr.mxu0 0.0
    %225 = vmatpush1.msra.mxu0 0.0
    %226 = vmatprep.subr.mxu0 0.0
    %227 = vmatpush1.msra.mxu0 0.0
    %228 = vmatprep.subr.mxu0 0.0
    %229 = vmatpush1.msra.mxu0 0.0
    %230 = vmatprep.subr.mxu0 0.0
    %231 = vmatpush1.msra.mxu0 0.0
    %232 = vmatprep.subr.mxu0 0.0
    %233 = vmatpush1.msra.mxu0 0.0
    %234 = vmatprep.subr.mxu0 0.0
    %235 = vmatpush1.msra.mxu0 0.0
    %236 = vmatprep.subr.mxu0 0.0
    %237 = vmatpush1.msra.mxu0 0.0
    %238 = vmatprep.subr.mxu0 0.0
    %239 = vmatpush1.msra.mxu0 0.0
    %240 = vmatprep.subr.mxu0 0.0
    %241 = vmatpush1.msra.mxu0 0.0
    %242 = vmatprep.subr.mxu0 0.0
    %243 = vmatpush1.msra.mxu0 0.0
    %244 = vmatprep.subr.mxu0 0.0
    %245 = vmatpush1.msra.mxu0 0.0
    %246 = vmatprep.subr.mxu0 0.0
    %247 = vmatpush1.msra.mxu0 0.0
    %248 = vmatprep.subr.mxu0 0.0
    %249 = vmatpush1.msra.mxu0 0.0
    %250 = vmatprep.subr.mxu0 0.0
    %251 = vmatpush1.msra.mxu0 0.0
    %252 = vmatprep.subr.mxu0 0.0
    %253 = vmatpush1.msra.mxu0 0.0
    %254 = vmatprep.subr.mxu0 0.0
    %255 = vmatpush1.msra.mxu0 0.0
    %256 = vmatprep.subr.mxu0 0.0
    %257 = vmatpush1.msra.mxu0 0.0
    %258 = vmatprep.subr.mxu0 0.0
    %259 = vmatpush1.msra.mxu0 0.0
    %260 = vmatprep.subr.mxu0 0.0
    %261 = vmatpush1.msra.mxu0 0.0
    %262 = vmatprep.subr.mxu0 0.0
    %263 = vmatpush1.msra.mxu0 0.0
    %264 = vmatprep.subr.mxu0 0.0
    %265 = vmatpush1.msra.mxu0 0.0
    %266 = vmatprep.subr.mxu0 0.0
    %267 = vmatpush1.msra.mxu0 0.0
    %268 = vmatprep.subr.mxu0 0.0
    %269 = vmatpush1.msra.mxu0 0.0
    %270 = vmatprep.subr.mxu0 0.0
    %271 = vmatpush1.msra.mxu0 0.0
    %272 = vmatprep.subr.mxu0 0.0
    %273 = vmatpush1.msra.mxu0 0.0
    %274 = vmatprep.subr.mxu0 0.0
    %275 = vmatpush1.msra.mxu0 0.0
    %276 = vmatprep.subr.mxu0 0.0
    %277 = vmatpush1.msra.mxu0 0.0
    %278 = vmatprep.mubr.f32.mxu0 0.0
    %279 = vmatmul.mubr.f32.gmra.mrb[0].mxu0 %v212
    %v280 = vpop.f32.mrb[0].mxu0
    %v281 = vadd.f32 %v209, %v280
    %v282 = vpop.f32.mrb[0].mxu0
    %283 = vdwg.mxu0
    %v284 = vmax.f32 %v281, 0.0
    %v285 = vld [vmem:[#allocation5 + $0x48] sm:$0xff]
    %v286 = vld [vmem:[#allocation5 + $0x50] sm:$0xff]
    %v287 = vld [vmem:[#allocation5 + $0x58] sm:$0xff]
    %v288 = vld [vmem:[#allocation5 + $0x60] sm:$0xff]
    %v289 = vld [vmem:[#allocation5 + $0x68] sm:$0x1]
    %v290 = vlaneseq
    %v291 = vshrl.u32 %v290, 7
    %v292 = vsub.s32 0, %v291
    %v293 = vrot.slane %v289, %v292
    %v295 = vsel %vm210, %v284, 0
    %297 = vmatprep.subr.mxu0 0.0
    %298 = vmatpush1.msra.mxu0 %v285
    %299 = vmatprep.subr.mxu0 0.0
    %300 = vmatpush1.msra.mxu0 %v286
    %301 = vmatprep.subr.mxu0 0.0
    %302 = vmatpush1.msra.mxu0 %v287
    %303 = vmatprep.subr.mxu0 0.0
    %304 = vmatpush1.msra.mxu0 %v288
    %305 = vmatprep.subr.mxu0 0.0
    %306 = vmatpush1.msra.mxu0 0.0
    %307 = vmatprep.subr.mxu0 0.0
    %308 = vmatpush1.msra.mxu0 0.0
    %309 = vmatprep.subr.mxu0 0.0
    %310 = vmatpush1.msra.mxu0 0.0
    %311 = vmatprep.subr.mxu0 0.0
    %312 = vmatpush1.msra.mxu0 0.0
    %313 = vmatprep.subr.mxu0 0.0
    %314 = vmatpush1.msra.mxu0 0.0
    %315 = vmatprep.subr.mxu0 0.0
    %316 = vmatpush1.msra.mxu0 0.0
    %317 = vmatprep.subr.mxu0 0.0
    %318 = vmatpush1.msra.mxu0 0.0
    %319 = vmatprep.subr.mxu0 0.0
    %320 = vmatpush1.msra.mxu0 0.0
    %321 = vmatprep.subr.mxu0 0.0
    %322 = vmatpush1.msra.mxu0 0.0
    %323 = vmatprep.subr.mxu0 0.0
    %324 = vmatpush1.msra.mxu0 0.0
    %325 = vmatprep.subr.mxu0 0.0
    %326 = vmatpush1.msra.mxu0 0.0
    %327 = vmatprep.subr.mxu0 0.0
    %328 = vmatpush1.msra.mxu0 0.0
    %329 = vmatprep.subr.mxu0 0.0
    %330 = vmatpush1.msra.mxu0 0.0
    %331 = vmatprep.subr.mxu0 0.0
    %332 = vmatpush1.msra.mxu0 0.0
    %333 = vmatprep.subr.mxu0 0.0
    %334 = vmatpush1.msra.mxu0 0.0
    %335 = vmatprep.subr.mxu0 0.0
    %336 = vmatpush1.msra.mxu0 0.0
    %337 = vmatprep.subr.mxu0 0.0
    %338 = vmatpush1.msra.mxu0 0.0
    %339 = vmatprep.subr.mxu0 0.0
    %340 = vmatpush1.msra.mxu0 0.0
    %341 = vmatprep.subr.mxu0 0.0
    %342 = vmatpush1.msra.mxu0 0.0
    %343 = vmatprep.subr.mxu0 0.0
    %344 = vmatpush1.msra.mxu0 0.0
    %345 = vmatprep.subr.mxu0 0.0
    %346 = vmatpush1.msra.mxu0 0.0
    %347 = vmatprep.subr.mxu0 0.0
    %348 = vmatpush1.msra.mxu0 0.0
    %349 = vmatprep.subr.mxu0 0.0
    %350 = vmatpush1.msra.mxu0 0.0
    %351 = vmatprep.subr.mxu0 0.0
    %352 = vmatpush1.msra.mxu0 0.0
    %353 = vmatprep.subr.mxu0 0.0
    %354 = vmatpush1.msra.mxu0 0.0
    %355 = vmatprep.subr.mxu0 0.0
    %356 = vmatpush1.msra.mxu0 0.0
    %357 = vmatprep.subr.mxu0 0.0
    %358 = vmatpush1.msra.mxu0 0.0
    %359 = vmatprep.subr.mxu0 0.0
    %360 = vmatpush1.msra.mxu0 0.0
    %361 = vmatprep.mubr.f32.mxu0 0.0
    %362 = vmatmul.mubr.f32.gmra.mrb[0].mxu0 %v295
    %v363 = vpop.f32.mrb[0].mxu0
    %v364 = vadd.f32 %v293, %v363
    %v365 = vpop.f32.mrb[0].mxu0
    %366 = vdwg.mxu0
    %v367 = vmax.f32 %v364, 0.0
    %v368 = vld [vmem:[#allocation5 + $0x70] sm:$0xff]
    %v369 = vld [vmem:[#allocation5 + $0x78] sm:$0xff]
    %v370 = vld [vmem:[#allocation5 + $0x80] sm:$0xff]
    %v371 = vld [vmem:[#allocation5 + $0x88] sm:$0xff]
    %v372 = vld [vmem:[#allocation5 + $0x90] sm:$0x1]
    %v373 = vlaneseq
    %v374 = vshrl.u32 %v373, 7
    %v375 = vsub.s32 0, %v374
    %v376 = vrot.slane %v372, %v375
    %v378 = vsel %vm210, %v367, 0
    %380 = vmatprep.subr.mxu0 0.0
    %381 = vmatpush1.msra.mxu0 %v368
    %382 = vmatprep.subr.mxu0 0.0
    %383 = vmatpush1.msra.mxu0 %v369
    %384 = vmatprep.subr.mxu0 0.0
    %385 = vmatpush1.msra.mxu0 %v370
    %386 = vmatprep.subr.mxu0 0.0
    %387 = vmatpush1.msra.mxu0 %v371
    %388 = vmatprep.subr.mxu0 0.0
    %389 = vmatpush1.msra.mxu0 0.0
    %390 = vmatprep.subr.mxu0 0.0
    %391 = vmatpush1.msra.mxu0 0.0
    %392 = vmatprep.subr.mxu0 0.0
    %393 = vmatpush1.msra.mxu0 0.0
    %394 = vmatprep.subr.mxu0 0.0
    %395 = vmatpush1.msra.mxu0 0.0
    %396 = vmatprep.subr.mxu0 0.0
    %397 = vmatpush1.msra.mxu0 0.0
    %398 = vmatprep.subr.mxu0 0.0
    %399 = vmatpush1.msra.mxu0 0.0
    %400 = vmatprep.subr.mxu0 0.0
    %401 = vmatpush1.msra.mxu0 0.0
    %402 = vmatprep.subr.mxu0 0.0
    %403 = vmatpush1.msra.mxu0 0.0
    %404 = vmatprep.subr.mxu0 0.0
    %405 = vmatpush1.msra.mxu0 0.0
    %406 = vmatprep.subr.mxu0 0.0
    %407 = vmatpush1.msra.mxu0 0.0
    %408 = vmatprep.subr.mxu0 0.0
    %409 = vmatpush1.msra.mxu0 0.0
    %410 = vmatprep.subr.mxu0 0.0
    %411 = vmatpush1.msra.mxu0 0.0
    %412 = vmatprep.subr.mxu0 0.0
    %413 = vmatpush1.msra.mxu0 0.0
    %414 = vmatprep.subr.mxu0 0.0
    %415 = vmatpush1.msra.mxu0 0.0
    %416 = vmatprep.subr.mxu0 0.0
    %417 = vmatpush1.msra.mxu0 0.0
    %418 = vmatprep.subr.mxu0 0.0
    %419 = vmatpush1.msra.mxu0 0.0
    %420 = vmatprep.subr.mxu0 0.0
    %421 = vmatpush1.msra.mxu0 0.0
    %422 = vmatprep.subr.mxu0 0.0
    %423 = vmatpush1.msra.mxu0 0.0
    %424 = vmatprep.subr.mxu0 0.0
    %425 = vmatpush1.msra.mxu0 0.0
    %426 = vmatprep.subr.mxu0 0.0
    %427 = vmatpush1.msra.mxu0 0.0
    %428 = vmatprep.subr.mxu0 0.0
    %429 = vmatpush1.msra.mxu0 0.0
    %430 = vmatprep.subr.mxu0 0.0
    %431 = vmatpush1.msra.mxu0 0.0
    %432 = vmatprep.subr.mxu0 0.0
    %433 = vmatpush1.msra.mxu0 0.0
    %434 = vmatprep.subr.mxu0 0.0
    %435 = vmatpush1.msra.mxu0 0.0
    %436 = vmatprep.subr.mxu0 0.0
    %437 = vmatpush1.msra.mxu0 0.0
    %438 = vmatprep.subr.mxu0 0.0
    %439 = vmatpush1.msra.mxu0 0.0
    %440 = vmatprep.subr.mxu0 0.0
    %441 = vmatpush1.msra.mxu0 0.0
    %442 = vmatprep.subr.mxu0 0.0
    %443 = vmatpush1.msra.mxu0 0.0
    %444 = vmatprep.mubr.f32.mxu0 0.0
    %445 = vmatmul.mubr.f32.gmra.mrb[0].mxu0 %v378
    %v446 = vpop.f32.mrb[0].mxu0
    %v447 = vadd.f32 %v376, %v446
    %v448 = vpop.f32.mrb[0].mxu0
    %449 = vdwg.mxu0
    %450 = vst [vmem:[#allocation7] sm:$0x3] %v447
    // Predicated region
    $region22: #{tpu_custom_call.1} parent=1 // pred_check
      _
    $region23: #{tpu_custom_call.1} parent=1 // pred_check_branch
      %452 = sbr.rel (0) target = $region25
    $region24: #{tpu_custom_call.1} parent=1 // pred_region
      %s454 = ssub.s32 32, 32
      %455 = vsyncadd [#allocation4], %s454
      %s457 = sshll.u32 [#allocation7], 4
      %s458 = int_to_ptr.vmem [resolvable:$true] %s457
      %460 = dma.vmem_to_hbm [thread:$0]  %s458, 32, %s3, [#allocation4]
    $region25: #{tpu_custom_call.1} parent=1 // pred_fallthru
      _
    // Predicated region
    $region26: #{tpu_custom_call.1} parent=1 // pred_check
      _
    $region27: #{tpu_custom_call.1} parent=1 // pred_check_branch
      %462 = sbr.rel (0) target = $region29
    $region28: #{tpu_custom_call.1} parent=1 // pred_region
      %463 = dma.done [#allocation4], 32
    $region29: #{tpu_custom_call.1} parent=1 // pred_fallthru
      _
    %464 = vsyncpa [#allocation3], 1
    %465 = vsyncpa [#allocation6], 1
    %466 = vsyncpa [#allocation4], 1

</llo_original>
